<compile_context>
chip_gen: v5e
topology: v5e:2x2
jax: 0.10.0
libtpu: 0.0.40
codegen_flags: <defaults>
</compile_context>

<pallas_src>
import functools

import jax
import jax.numpy as jnp
import numpy as np
from jax.experimental import pallas as pl
from jax.experimental.pallas import tpu as pltpu

NEG_SLOPE = 0.01   # nn.LeakyReLU default
BN_EPS = 1e-5      # nn.BatchNorm2d default


def _tap_offsets():
    # (dy, dx) for the 9 conv taps, row-major over the 3x3 kernel so that
    # tap index t == (dy + 1) * 3 + (dx + 1) matches the flattened weights.
    return [(dy, dx) for dy in (-1, 0, 1) for dx in (-1, 0, 1)]


def _conv_lrelu_bn(x, w_sparse, b_rows, g_rows, bt_rows, taps_meta, N, C_out, HW):
    """One stage on the lane-dense layout.

    x        : (N*C_in, HW)        spatial on lanes, (image, channel) on sublanes
    w_sparse : (N*C_out, 9*N*C_in) per-image block-diagonal im2col weights
    b/g/bt   : (N*C_out, 1)        conv bias / BN gamma / BN beta (tiled over images)
    taps_meta: 9 x (lane_shift, border_mask (1, HW) f32 or None for center tap)
    returns  : (N*C_out, HW) float32
    """
    # 9 shifted + masked taps.  Each tap is a full aligned (N*C_in, HW) tile, so
    # stacking along sublanes involves no cross-lane shuffles or masked selects.
    cols = []
    for shift, mask in taps_meta:
        t = x if shift == 0 else pltpu.roll(x, shift, 1)
        cols.append(t if mask is None else t * mask)
    patches = jnp.concatenate(cols, axis=0)               # (9*N*C_in, HW)

    # Single MXU matmul; result rows = (image, channel), lanes = H*W.
    acc = jnp.dot(w_sparse, patches,
                  preferred_element_type=jnp.float32) + b_rows   # (N*C_out, HW)

    # LeakyReLU
    y = jnp.where(acc > 0, acc, NEG_SLOPE * acc)

    # BatchNorm2d (training mode): per-channel stats over all N*H*W positions.
    # Lane reduction per row (XLU), then an aligned fold over the N row-blocks.
    inv_m = 1.0 / (N * HW)

    def fold_images(rows):                                 # (N*C_out,1) -> (C_out,1)
        s = rows[0:C_out]
        for n in range(1, N):
            s = s + rows[n * C_out:(n + 1) * C_out]
        return s

    def tile_images(ch):                                   # (C_out,1) -> (N*C_out,1)
        return ch if N == 1 else jnp.concatenate([ch] * N, axis=0)

    mean_ch = fold_images(jnp.sum(y, axis=1, keepdims=True)) * inv_m
    mean_rows = tile_images(mean_ch)
    centered = y - mean_rows
    var_ch = fold_images(jnp.sum(centered * centered, axis=1, keepdims=True)) * inv_m
    scale_rows = g_rows * jax.lax.rsqrt(tile_images(var_ch) + BN_EPS)
    return centered * scale_rows + bt_rows                 # fused scale/shift


def dense_block2_kernel(x_ref, mask_ref,
                        w1_ref, b1_ref, g1_ref, bt1_ref,
                        w2_ref, b2_ref, g2_ref, bt2_ref,
                        o_ref, *, N, H, W, CH):
    """Fused DenseBlock2 forward.

    x_ref   : (N*Cin, H*W)    NCHW input flattened (rows = (image, channel))
    mask_ref: (9, H*W)        f32 border masks per tap (shared by both stages)
    o_ref   : (N*2*CH, H*W)   NCHW output flattened (channel concat interleaved)
    """
    HW = H * W

    # Tap metadata (lane-roll amount + border mask), loaded once for both stages.
    taps_meta = []
    for t, (dy, dx) in enumerate(_tap_offsets()):
        shift = (-(dy * W + dx)) % HW                      # roll so lane p reads p+dy*W+dx
        mask = None if (dy == 0 and dx == 0) else mask_ref[t:t + 1, :]
        taps_meta.append((shift, mask))

    x = x_ref[...]                                         # (N*Cin, HW)
    x0 = _conv_lrelu_bn(x, w1_ref[...], b1_ref[...], g1_ref[...], bt1_ref[...],
                        taps_meta, N, CH, HW)              # (N*CH, HW), stays in vregs
    x1 = _conv_lrelu_bn(x0, w2_ref[...], b2_ref[...], g2_ref[...], bt2_ref[...],
                        taps_meta, N, CH, HW)              # (N*CH, HW)

    # Channel concat written directly in NCHW row order: 8-aligned sublane slabs,
    # 256-lane rows -> unmasked full stores; wrapper only reshapes (free).
    for n in range(N):
        o_ref[n * 2 * CH:n * 2 * CH + CH, :] = x0[n * CH:(n + 1) * CH, :]
        o_ref[n * 2 * CH + CH:(n + 1) * 2 * CH, :] = x1[n * CH:(n + 1) * CH, :]


def _block_sparse_weight(w9, n_img):
    """(9, Cin, Cout) tap-major conv weights -> (n_img*Cout, 9*n_img*Cin)
    block-diagonal-per-image im2col matrix matching the (image, channel) rows."""
    _, cin, cout = w9.shape
    eye = jnp.eye(n_img, dtype=w9.dtype)
    ws = jnp.einsum("tio,nm->notmi", w9, eye)              # (N, Cout, 9, N, Cin)
    return ws.reshape(n_img * cout, 9 * n_img * cin)


def _border_masks(H, W):
    """(9, H*W) f32: 1 where a tap reads a real pixel, 0 where it reads zero-pad."""
    p = np.arange(H * W)
    hh, ww = p // W, p % W
    rows = []
    for dy, dx in _tap_offsets():
        ok = (hh + dy >= 0) & (hh + dy < H) & (ww + dx >= 0) & (ww + dx < W)
        rows.append(ok.astype(np.float32))
    return jnp.asarray(np.stack(rows, axis=0))


def dense_block2(x_nchw, params):
    """Equivalent of DenseBlock2.forward. Input/output are NCHW like PyTorch."""
    N, Cin, H, W = x_nchw.shape
    CH = params["w1"].shape[-1]

    x2d = x_nchw.reshape(N * Cin, H * W)                   # free view, no transpose
    masks = _border_masks(H, W)
    w1s = _block_sparse_weight(params["w1"], N)
    w2s = _block_sparse_weight(params["w2"], N)
    tile_rows = lambda v: jnp.tile(v.reshape(-1, 1), (N, 1))   # (N*CH, 1)

    # Gridless single-program kernel: BN needs global batch stats and the whole
    # problem fits in a handful of vregs; tile over N/H with accumulated BN
    # stats (parallel grid) only at much larger shapes / for v7x's second TC.
    out2d = pl.pallas_call(
        functools.partial(dense_block2_kernel, N=N, H=H, W=W, CH=CH),
        out_shape=jax.ShapeDtypeStruct((N * 2 * CH, H * W), jnp.float32),
        in_specs=[pl.BlockSpec(memory_space=pltpu.MemorySpace.VMEM)] * 10,
        out_specs=pl.BlockSpec(memory_space=pltpu.MemorySpace.VMEM),
    )(x2d, masks,
      w1s, tile_rows(params["b1"]), tile_rows(params["g1"]), tile_rows(params["bt1"]),
      w2s, tile_rows(params["b2"]), tile_rows(params["g2"]), tile_rows(params["bt2"]))

    return out2d.reshape(N, 2 * CH, H, W)                  # free view back to NCHW


# -------- pure-JAX reference (for a correctness check) --------
def _ref_stage(x_nchw, w9, b, g, bt):
    cin, cout = w9.shape[1], w9.shape[2]
    w = jnp.transpose(w9.reshape(3, 3, cin, cout), (3, 2, 0, 1))  # OIHW
    y = jax.lax.conv_general_dilated(
        x_nchw, w, window_strides=(1, 1), padding=((1, 1), (1, 1)),
        dimension_numbers=("NCHW", "OIHW", "NCHW"))
    y = y + b.reshape(1, -1, 1, 1)
    y = jnp.where(y > 0, y, NEG_SLOPE * y)
    mean = jnp.mean(y, axis=(0, 2, 3), keepdims=True)
    var = jnp.mean((y - mean) ** 2, axis=(0, 2, 3), keepdims=True)
    return (y - mean) / jnp.sqrt(var + BN_EPS) * g.reshape(1, -1, 1, 1) \
           + bt.reshape(1, -1, 1, 1)


def _ref_dense_block2(x, p):
    x0 = _ref_stage(x, p["w1"], p["b1"], p["g1"], p["bt1"])
    x1 = _ref_stage(x0, p["w2"], p["b2"], p["g2"], p["bt2"])
    return jnp.concatenate([x0, x1], axis=1)


if __name__ == "__main__":
    # Module hyper-parameters (DenseBlock2(in_dim, channels))
    N, IN_DIM, CH, H, W = 2, 4, 8, 16, 16

    key = jax.random.PRNGKey(0)
    k1, k2, k3, k4, kx = jax.random.split(key, 5)

    # Conv weights stored tap-major as (9, Cin, Cout) (t = ky*3 + kx); the
    # wrapper expands them into the per-image block-diagonal im2col matrix.
    params = {
        "w1": jax.random.normal(k1, (9, IN_DIM, CH), jnp.float32) * 0.2,
        "b1": jax.random.normal(k2, (CH,), jnp.float32) * 0.1,
        "g1": jnp.ones((CH,), jnp.float32),
        "bt1": jnp.zeros((CH,), jnp.float32),
        "w2": jax.random.normal(k3, (9, CH, CH), jnp.float32) * 0.2,
        "b2": jax.random.normal(k4, (CH,), jnp.float32) * 0.1,
        "g2": jnp.ones((CH,), jnp.float32),
        "bt2": jnp.zeros((CH,), jnp.float32),
    }

    x = jax.random.normal(kx, (N, IN_DIM, H, W), jnp.float32)

    out = dense_block2(x, params)
    out = jax.block_until_ready(out)
    assert out.shape == (N, 2 * CH, H, W), out.shape

    ref = jax.block_until_ready(_ref_dense_block2(x, params))
    np.testing.assert_allclose(np.asarray(out), np.asarray(ref),
                               rtol=1e-4, atol=1e-4)

    print("KERNEL_OK")
</pallas_src>

<mosaic_0001>
module attributes {stable_mosaic.version = 11 : i64} {
  func.func @dense_block2_kernel(%arg0: memref<8x256xf32, #tpu.memory_space<vmem>>, %arg1: memref<9x256xf32, #tpu.memory_space<vmem>>, %arg2: memref<16x72xf32, #tpu.memory_space<vmem>>, %arg3: memref<16x1xf32, #tpu.memory_space<vmem>>, %arg4: memref<16x1xf32, #tpu.memory_space<vmem>>, %arg5: memref<16x1xf32, #tpu.memory_space<vmem>>, %arg6: memref<16x144xf32, #tpu.memory_space<vmem>>, %arg7: memref<16x1xf32, #tpu.memory_space<vmem>>, %arg8: memref<16x1xf32, #tpu.memory_space<vmem>>, %arg9: memref<16x1xf32, #tpu.memory_space<vmem>>, %arg10: memref<32x256xf32, #tpu.memory_space<vmem>>) attributes {dimension_semantics = [], scalar_prefetch = 0 : i64, scratch_operands = 0 : i64, tpu.core_type = #tpu.core_type<tc>} {
    %c0 = arith.constant 0 : index
    %c0_0 = arith.constant 0 : index
    %0 = vector.load %arg1[%c0, %c0_0] : memref<9x256xf32, #tpu.memory_space<vmem>>, vector<1x256xf32>
    %c1 = arith.constant 1 : index
    %c0_1 = arith.constant 0 : index
    %1 = vector.load %arg1[%c1, %c0_1] : memref<9x256xf32, #tpu.memory_space<vmem>>, vector<1x256xf32>
    %c2 = arith.constant 2 : index
    %c0_2 = arith.constant 0 : index
    %2 = vector.load %arg1[%c2, %c0_2] : memref<9x256xf32, #tpu.memory_space<vmem>>, vector<1x256xf32>
    %c3 = arith.constant 3 : index
    %c0_3 = arith.constant 0 : index
    %3 = vector.load %arg1[%c3, %c0_3] : memref<9x256xf32, #tpu.memory_space<vmem>>, vector<1x256xf32>
    %c5 = arith.constant 5 : index
    %c0_4 = arith.constant 0 : index
    %4 = vector.load %arg1[%c5, %c0_4] : memref<9x256xf32, #tpu.memory_space<vmem>>, vector<1x256xf32>
    %c6 = arith.constant 6 : index
    %c0_5 = arith.constant 0 : index
    %5 = vector.load %arg1[%c6, %c0_5] : memref<9x256xf32, #tpu.memory_space<vmem>>, vector<1x256xf32>
    %c7 = arith.constant 7 : index
    %c0_6 = arith.constant 0 : index
    %6 = vector.load %arg1[%c7, %c0_6] : memref<9x256xf32, #tpu.memory_space<vmem>>, vector<1x256xf32>
    %c8 = arith.constant 8 : index
    %c0_7 = arith.constant 0 : index
    %7 = vector.load %arg1[%c8, %c0_7] : memref<9x256xf32, #tpu.memory_space<vmem>>, vector<1x256xf32>
    %c0_8 = arith.constant 0 : index
    %c0_9 = arith.constant 0 : index
    %8 = vector.load %arg0[%c0_8, %c0_9] : memref<8x256xf32, #tpu.memory_space<vmem>>, vector<8x256xf32>
    %c0_10 = arith.constant 0 : index
    %c0_11 = arith.constant 0 : index
    %9 = vector.load %arg2[%c0_10, %c0_11] : memref<16x72xf32, #tpu.memory_space<vmem>>, vector<16x72xf32>
    %c0_12 = arith.constant 0 : index
    %c0_13 = arith.constant 0 : index
    %10 = vector.load %arg3[%c0_12, %c0_13] : memref<16x1xf32, #tpu.memory_space<vmem>>, vector<16x1xf32>
    %c0_14 = arith.constant 0 : index
    %c0_15 = arith.constant 0 : index
    %11 = vector.load %arg4[%c0_14, %c0_15] : memref<16x1xf32, #tpu.memory_space<vmem>>, vector<16x1xf32>
    %c0_16 = arith.constant 0 : index
    %c0_17 = arith.constant 0 : index
    %12 = vector.load %arg5[%c0_16, %c0_17] : memref<16x1xf32, #tpu.memory_space<vmem>>, vector<16x1xf32>
    %c17_i32 = arith.constant 17 : i32
    %13 = tpu.dynamic_rotate %8 by %c17_i32 dim 1 : vector<8x256xf32>, i32 -> vector<8x256xf32>
    %14 = vector.broadcast %0 : vector<1x256xf32> to vector<8x256xf32>
    %15 = arith.mulf %13, %14 : vector<8x256xf32>
    %c16_i32 = arith.constant 16 : i32
    %16 = tpu.dynamic_rotate %8 by %c16_i32 dim 1 : vector<8x256xf32>, i32 -> vector<8x256xf32>
    %17 = vector.broadcast %1 : vector<1x256xf32> to vector<8x256xf32>
    %18 = arith.mulf %16, %17 : vector<8x256xf32>
    %c15_i32 = arith.constant 15 : i32
    %19 = tpu.dynamic_rotate %8 by %c15_i32 dim 1 : vector<8x256xf32>, i32 -> vector<8x256xf32>
    %20 = vector.broadcast %2 : vector<1x256xf32> to vector<8x256xf32>
    %21 = arith.mulf %19, %20 : vector<8x256xf32>
    %c1_i32 = arith.constant 1 : i32
    %22 = tpu.dynamic_rotate %8 by %c1_i32 dim 1 : vector<8x256xf32>, i32 -> vector<8x256xf32>
    %23 = vector.broadcast %3 : vector<1x256xf32> to vector<8x256xf32>
    %24 = arith.mulf %22, %23 : vector<8x256xf32>
    %c255_i32 = arith.constant 255 : i32
    %25 = tpu.dynamic_rotate %8 by %c255_i32 dim 1 : vector<8x256xf32>, i32 -> vector<8x256xf32>
    %26 = vector.broadcast %4 : vector<1x256xf32> to vector<8x256xf32>
    %27 = arith.mulf %25, %26 : vector<8x256xf32>
    %c241_i32 = arith.constant 241 : i32
    %28 = tpu.dynamic_rotate %8 by %c241_i32 dim 1 : vector<8x256xf32>, i32 -> vector<8x256xf32>
    %29 = vector.broadcast %5 : vector<1x256xf32> to vector<8x256xf32>
    %30 = arith.mulf %28, %29 : vector<8x256xf32>
    %c240_i32 = arith.constant 240 : i32
    %31 = tpu.dynamic_rotate %8 by %c240_i32 dim 1 : vector<8x256xf32>, i32 -> vector<8x256xf32>
    %32 = vector.broadcast %6 : vector<1x256xf32> to vector<8x256xf32>
    %33 = arith.mulf %31, %32 : vector<8x256xf32>
    %c239_i32 = arith.constant 239 : i32
    %34 = tpu.dynamic_rotate %8 by %c239_i32 dim 1 : vector<8x256xf32>, i32 -> vector<8x256xf32>
    %35 = vector.broadcast %7 : vector<1x256xf32> to vector<8x256xf32>
    %36 = arith.mulf %34, %35 : vector<8x256xf32>
    %37 = tpu.concatenate %15, %18, %21, %24, %8, %27, %30, %33, %36 in 0 : vector<8x256xf32>, vector<8x256xf32>, vector<8x256xf32>, vector<8x256xf32>, vector<8x256xf32>, vector<8x256xf32>, vector<8x256xf32>, vector<8x256xf32>, vector<8x256xf32> -> vector<72x256xf32>
    %cst = arith.constant dense<0.000000e+00> : vector<16x256xf32>
    %38 = tpu.matmul %9, %37, %cst {dimension_numbers = #tpu.dot_dimension_numbers<[1], [0], [0], [1], [0, 0, 1, 1], [], []>} : vector<16x72xf32>, vector<72x256xf32>, vector<16x256xf32> -> vector<16x256xf32>
    %39 = vector.broadcast %10 : vector<16x1xf32> to vector<16x256xf32>
    %40 = arith.addf %38, %39 : vector<16x256xf32>
    %cst_18 = arith.constant 0.000000e+00 : f32
    %41 = vector.broadcast %cst_18 : f32 to vector<16x256xf32>
    %42 = arith.cmpf ogt, %40, %41 : vector<16x256xf32>
    %cst_19 = arith.constant 0.00999999977 : f32
    %43 = vector.broadcast %cst_19 : f32 to vector<16x256xf32>
    %44 = arith.mulf %43, %40 : vector<16x256xf32>
    %45 = arith.select %42, %40, %44 : vector<16x256xi1>, vector<16x256xf32>
    %cst_20 = arith.constant dense<0.000000e+00> : vector<16xf32>
    %46 = vector.multi_reduction <add>, %45, %cst_20 [1] : vector<16x256xf32> to vector<16xf32>
    %47 = vector.shape_cast %46 : vector<16xf32> to vector<16x1xf32>
    %48 = vector.extract_strided_slice %47 {offsets = [0, 0], sizes = [8, 1], strides = [1, 1]} : vector<16x1xf32> to vector<8x1xf32>
    %49 = vector.extract_strided_slice %47 {offsets = [8, 0], sizes = [8, 1], strides = [1, 1]} : vector<16x1xf32> to vector<8x1xf32>
    %50 = arith.addf %48, %49 : vector<8x1xf32>
    %cst_21 = arith.constant 0.001953125 : f32
    %51 = vector.broadcast %cst_21 : f32 to vector<8x1xf32>
    %52 = arith.mulf %50, %51 : vector<8x1xf32>
    %53 = tpu.concatenate %52, %52 in 0 : vector<8x1xf32>, vector<8x1xf32> -> vector<16x1xf32>
    %54 = vector.broadcast %53 : vector<16x1xf32> to vector<16x256xf32>
    %55 = arith.subf %45, %54 : vector<16x256xf32>
    %56 = arith.mulf %55, %55 : vector<16x256xf32>
    %cst_22 = arith.constant dense<0.000000e+00> : vector<16xf32>
    %57 = vector.multi_reduction <add>, %56, %cst_22 [1] : vector<16x256xf32> to vector<16xf32>
    %58 = vector.shape_cast %57 : vector<16xf32> to vector<16x1xf32>
    %59 = vector.extract_strided_slice %58 {offsets = [0, 0], sizes = [8, 1], strides = [1, 1]} : vector<16x1xf32> to vector<8x1xf32>
    %60 = vector.extract_strided_slice %58 {offsets = [8, 0], sizes = [8, 1], strides = [1, 1]} : vector<16x1xf32> to vector<8x1xf32>
    %61 = arith.addf %59, %60 : vector<8x1xf32>
    %cst_23 = arith.constant 0.001953125 : f32
    %62 = vector.broadcast %cst_23 : f32 to vector<8x1xf32>
    %63 = arith.mulf %61, %62 : vector<8x1xf32>
    %64 = tpu.concatenate %63, %63 in 0 : vector<8x1xf32>, vector<8x1xf32> -> vector<16x1xf32>
    %cst_24 = arith.constant 9.99999974E-6 : f32
    %65 = vector.broadcast %cst_24 : f32 to vector<16x1xf32>
    %66 = arith.addf %64, %65 : vector<16x1xf32>
    %67 = math.rsqrt %66 : vector<16x1xf32>
    %68 = arith.mulf %11, %67 : vector<16x1xf32>
    %69 = vector.broadcast %68 : vector<16x1xf32> to vector<16x256xf32>
    %70 = arith.mulf %55, %69 : vector<16x256xf32>
    %71 = vector.broadcast %12 : vector<16x1xf32> to vector<16x256xf32>
    %72 = arith.addf %70, %71 : vector<16x256xf32>
    %c0_25 = arith.constant 0 : index
    %c0_26 = arith.constant 0 : index
    %73 = vector.load %arg6[%c0_25, %c0_26] : memref<16x144xf32, #tpu.memory_space<vmem>>, vector<16x144xf32>
    %c0_27 = arith.constant 0 : index
    %c0_28 = arith.constant 0 : index
    %74 = vector.load %arg7[%c0_27, %c0_28] : memref<16x1xf32, #tpu.memory_space<vmem>>, vector<16x1xf32>
    %c0_29 = arith.constant 0 : index
    %c0_30 = arith.constant 0 : index
    %75 = vector.load %arg8[%c0_29, %c0_30] : memref<16x1xf32, #tpu.memory_space<vmem>>, vector<16x1xf32>
    %c0_31 = arith.constant 0 : index
    %c0_32 = arith.constant 0 : index
    %76 = vector.load %arg9[%c0_31, %c0_32] : memref<16x1xf32, #tpu.memory_space<vmem>>, vector<16x1xf32>
    %c17_i32_33 = arith.constant 17 : i32
    %77 = tpu.dynamic_rotate %72 by %c17_i32_33 dim 1 : vector<16x256xf32>, i32 -> vector<16x256xf32>
    %78 = vector.broadcast %0 : vector<1x256xf32> to vector<16x256xf32>
    %79 = arith.mulf %77, %78 : vector<16x256xf32>
    %c16_i32_34 = arith.constant 16 : i32
    %80 = tpu.dynamic_rotate %72 by %c16_i32_34 dim 1 : vector<16x256xf32>, i32 -> vector<16x256xf32>
    %81 = vector.broadcast %1 : vector<1x256xf32> to vector<16x256xf32>
    %82 = arith.mulf %80, %81 : vector<16x256xf32>
    %c15_i32_35 = arith.constant 15 : i32
    %83 = tpu.dynamic_rotate %72 by %c15_i32_35 dim 1 : vector<16x256xf32>, i32 -> vector<16x256xf32>
    %84 = vector.broadcast %2 : vector<1x256xf32> to vector<16x256xf32>
    %85 = arith.mulf %83, %84 : vector<16x256xf32>
    %c1_i32_36 = arith.constant 1 : i32
    %86 = tpu.dynamic_rotate %72 by %c1_i32_36 dim 1 : vector<16x256xf32>, i32 -> vector<16x256xf32>
    %87 = vector.broadcast %3 : vector<1x256xf32> to vector<16x256xf32>
    %88 = arith.mulf %86, %87 : vector<16x256xf32>
    %c255_i32_37 = arith.constant 255 : i32
    %89 = tpu.dynamic_rotate %72 by %c255_i32_37 dim 1 : vector<16x256xf32>, i32 -> vector<16x256xf32>
    %90 = vector.broadcast %4 : vector<1x256xf32> to vector<16x256xf32>
    %91 = arith.mulf %89, %90 : vector<16x256xf32>
    %c241_i32_38 = arith.constant 241 : i32
    %92 = tpu.dynamic_rotate %72 by %c241_i32_38 dim 1 : vector<16x256xf32>, i32 -> vector<16x256xf32>
    %93 = vector.broadcast %5 : vector<1x256xf32> to vector<16x256xf32>
    %94 = arith.mulf %92, %93 : vector<16x256xf32>
    %c240_i32_39 = arith.constant 240 : i32
    %95 = tpu.dynamic_rotate %72 by %c240_i32_39 dim 1 : vector<16x256xf32>, i32 -> vector<16x256xf32>
    %96 = vector.broadcast %6 : vector<1x256xf32> to vector<16x256xf32>
    %97 = arith.mulf %95, %96 : vector<16x256xf32>
    %c239_i32_40 = arith.constant 239 : i32
    %98 = tpu.dynamic_rotate %72 by %c239_i32_40 dim 1 : vector<16x256xf32>, i32 -> vector<16x256xf32>
    %99 = vector.broadcast %7 : vector<1x256xf32> to vector<16x256xf32>
    %100 = arith.mulf %98, %99 : vector<16x256xf32>
    %101 = tpu.concatenate %79, %82, %85, %88, %72, %91, %94, %97, %100 in 0 : vector<16x256xf32>, vector<16x256xf32>, vector<16x256xf32>, vector<16x256xf32>, vector<16x256xf32>, vector<16x256xf32>, vector<16x256xf32>, vector<16x256xf32>, vector<16x256xf32> -> vector<144x256xf32>
    %cst_41 = arith.constant dense<0.000000e+00> : vector<16x256xf32>
    %102 = tpu.matmul %73, %101, %cst_41 {dimension_numbers = #tpu.dot_dimension_numbers<[1], [0], [0], [1], [0, 0, 1, 1], [], []>} : vector<16x144xf32>, vector<144x256xf32>, vector<16x256xf32> -> vector<16x256xf32>
    %103 = vector.broadcast %74 : vector<16x1xf32> to vector<16x256xf32>
    %104 = arith.addf %102, %103 : vector<16x256xf32>
    %cst_42 = arith.constant 0.000000e+00 : f32
    %105 = vector.broadcast %cst_42 : f32 to vector<16x256xf32>
    %106 = arith.cmpf ogt, %104, %105 : vector<16x256xf32>
    %cst_43 = arith.constant 0.00999999977 : f32
    %107 = vector.broadcast %cst_43 : f32 to vector<16x256xf32>
    %108 = arith.mulf %107, %104 : vector<16x256xf32>
    %109 = arith.select %106, %104, %108 : vector<16x256xi1>, vector<16x256xf32>
    %cst_44 = arith.constant dense<0.000000e+00> : vector<16xf32>
    %110 = vector.multi_reduction <add>, %109, %cst_44 [1] : vector<16x256xf32> to vector<16xf32>
    %111 = vector.shape_cast %110 : vector<16xf32> to vector<16x1xf32>
    %112 = vector.extract_strided_slice %111 {offsets = [0, 0], sizes = [8, 1], strides = [1, 1]} : vector<16x1xf32> to vector<8x1xf32>
    %113 = vector.extract_strided_slice %111 {offsets = [8, 0], sizes = [8, 1], strides = [1, 1]} : vector<16x1xf32> to vector<8x1xf32>
    %114 = arith.addf %112, %113 : vector<8x1xf32>
    %cst_45 = arith.constant 0.001953125 : f32
    %115 = vector.broadcast %cst_45 : f32 to vector<8x1xf32>
    %116 = arith.mulf %114, %115 : vector<8x1xf32>
    %117 = tpu.concatenate %116, %116 in 0 : vector<8x1xf32>, vector<8x1xf32> -> vector<16x1xf32>
    %118 = vector.broadcast %117 : vector<16x1xf32> to vector<16x256xf32>
    %119 = arith.subf %109, %118 : vector<16x256xf32>
    %120 = arith.mulf %119, %119 : vector<16x256xf32>
    %cst_46 = arith.constant dense<0.000000e+00> : vector<16xf32>
    %121 = vector.multi_reduction <add>, %120, %cst_46 [1] : vector<16x256xf32> to vector<16xf32>
    %122 = vector.shape_cast %121 : vector<16xf32> to vector<16x1xf32>
    %123 = vector.extract_strided_slice %122 {offsets = [0, 0], sizes = [8, 1], strides = [1, 1]} : vector<16x1xf32> to vector<8x1xf32>
    %124 = vector.extract_strided_slice %122 {offsets = [8, 0], sizes = [8, 1], strides = [1, 1]} : vector<16x1xf32> to vector<8x1xf32>
    %125 = arith.addf %123, %124 : vector<8x1xf32>
    %cst_47 = arith.constant 0.001953125 : f32
    %126 = vector.broadcast %cst_47 : f32 to vector<8x1xf32>
    %127 = arith.mulf %125, %126 : vector<8x1xf32>
    %128 = tpu.concatenate %127, %127 in 0 : vector<8x1xf32>, vector<8x1xf32> -> vector<16x1xf32>
    %cst_48 = arith.constant 9.99999974E-6 : f32
    %129 = vector.broadcast %cst_48 : f32 to vector<16x1xf32>
    %130 = arith.addf %128, %129 : vector<16x1xf32>
    %131 = math.rsqrt %130 : vector<16x1xf32>
    %132 = arith.mulf %75, %131 : vector<16x1xf32>
    %133 = vector.broadcast %132 : vector<16x1xf32> to vector<16x256xf32>
    %134 = arith.mulf %119, %133 : vector<16x256xf32>
    %135 = vector.broadcast %76 : vector<16x1xf32> to vector<16x256xf32>
    %136 = arith.addf %134, %135 : vector<16x256xf32>
    %137 = vector.extract_strided_slice %72 {offsets = [0, 0], sizes = [8, 256], strides = [1, 1]} : vector<16x256xf32> to vector<8x256xf32>
    %c0_49 = arith.constant 0 : index
    %c0_50 = arith.constant 0 : index
    %138 = vector.load %arg10[%c0_49, %c0_50] : memref<32x256xf32, #tpu.memory_space<vmem>>, vector<8x256xf32>
    tpu.vector_store %arg10[%c0_49, %c0_50], %137 {strides = array<i32>} : memref<32x256xf32, #tpu.memory_space<vmem>>, vector<8x256xf32>,
    %139 = vector.extract_strided_slice %136 {offsets = [0, 0], sizes = [8, 256], strides = [1, 1]} : vector<16x256xf32> to vector<8x256xf32>
    %c8_51 = arith.constant 8 : index
    %c0_52 = arith.constant 0 : index
    %140 = vector.load %arg10[%c8_51, %c0_52] : memref<32x256xf32, #tpu.memory_space<vmem>>, vector<8x256xf32>
    tpu.vector_store %arg10[%c8_51, %c0_52], %139 {strides = array<i32>} : memref<32x256xf32, #tpu.memory_space<vmem>>, vector<8x256xf32>,
    %141 = vector.extract_strided_slice %72 {offsets = [8, 0], sizes = [8, 256], strides = [1, 1]} : vector<16x256xf32> to vector<8x256xf32>
    %c16 = arith.constant 16 : index
    %c0_53 = arith.constant 0 : index
    %142 = vector.load %arg10[%c16, %c0_53] : memref<32x256xf32, #tpu.memory_space<vmem>>, vector<8x256xf32>
    tpu.vector_store %arg10[%c16, %c0_53], %141 {strides = array<i32>} : memref<32x256xf32, #tpu.memory_space<vmem>>, vector<8x256xf32>,
    %143 = vector.extract_strided_slice %136 {offsets = [8, 0], sizes = [8, 256], strides = [1, 1]} : vector<16x256xf32> to vector<8x256xf32>
    %c24 = arith.constant 24 : index
    %c0_54 = arith.constant 0 : index
    %144 = vector.load %arg10[%c24, %c0_54] : memref<32x256xf32, #tpu.memory_space<vmem>>, vector<8x256xf32>
    tpu.vector_store %arg10[%c24, %c0_54], %143 {strides = array<i32>} : memref<32x256xf32, #tpu.memory_space<vmem>>, vector<8x256xf32>,
    return
  }
}

</mosaic_0001>

<llo_original>
// kernel: tpu_custom_call.1
$region0: #{tpu_custom_call.1}
  #allocation0 [shape = 'u32[]', space=smem, size = 0x4, offset = 0x4, fixed_abs, tag = 'smem constant byte address 0x4 - core index']
  #allocation1 [shape = 'u32[72,128]{1,0:T(1,128)}', space=vmem, size = 0x9000, scoped, tag = 'internal scratch']
  %s0 = inlined_call_operand.vmem [shape: f32[8,256], index: 0, kind: input, shape index: {}]
  %s1 = inlined_call_operand.vmem [shape: f32[9,256], index: 1, kind: input, shape index: {}]
  %s2 = inlined_call_operand.vmem [shape: f32[16,72], index: 2, kind: input, shape index: {}]
  %s3 = inlined_call_operand.vmem [shape: f32[16,1], index: 3, kind: input, shape index: {}]
  %s4 = inlined_call_operand.vmem [shape: f32[16,1], index: 4, kind: input, shape index: {}]
  %s5 = inlined_call_operand.vmem [shape: f32[16,1], index: 5, kind: input, shape index: {}]
  %s6 = inlined_call_operand.vmem [shape: f32[16,144], index: 6, kind: input, shape index: {}]
  %s7 = inlined_call_operand.vmem [shape: f32[16,1], index: 7, kind: input, shape index: {}]
  %s8 = inlined_call_operand.vmem [shape: f32[16,1], index: 8, kind: input, shape index: {}]
  %s9 = inlined_call_operand.vmem [shape: f32[16,1], index: 9, kind: input, shape index: {}]
  %s10 = inlined_call_operand.hbm [shape: f32[32,256], index: 10, kind: output, shape index: {}]
  %s11 = sld [smem:[#allocation0]]
  $region50: #{tpu_custom_call.1} parent=0
    _
  %s13 = ssub.s32 1, %s11
  %s14 = scalar_select 0, %s13, %s11
  $region1: #{tpu_custom_call.1} parent=0
    #allocation2 [shape = 'u8[32768]{0}', space=vmem, size = 0x8000, scoped, tag = 'output window, operand 0, single buffered']
    #allocation3 [shape = 's32[1]{0}', space=sflag, size = 0x4, scoped, tag = 'scoped memory for tpu_custom_call.1']
    %15 = vsyncpa [#allocation3], 0
    // Predicated region
    $region2: #{tpu_custom_call.1} parent=1 // pred_check
      _
    $region3: #{tpu_custom_call.1} parent=1 // pred_check_branch
      %17 = sbr.rel (0) target = $region5
    $region4: #{tpu_custom_call.1} parent=1 // pred_region
      _
    $region5: #{tpu_custom_call.1} parent=1 // pred_fallthru
      _
    // Predicated region
    $region6: #{tpu_custom_call.1} parent=1 // pred_check
      _
    $region7: #{tpu_custom_call.1} parent=1 // pred_check_branch
      %19 = sbr.rel (0) target = $region9
    $region8: #{tpu_custom_call.1} parent=1 // pred_region
      _
    $region9: #{tpu_custom_call.1} parent=1 // pred_fallthru
      _
    // Predicated region
    $region10: #{tpu_custom_call.1} parent=1 // pred_check
      _
    $region11: #{tpu_custom_call.1} parent=1 // pred_check_branch
      %21 = sbr.rel (0) target = $region13
    $region12: #{tpu_custom_call.1} parent=1 // pred_region
      _
    $region13: #{tpu_custom_call.1} parent=1 // pred_fallthru
      _
    // Predicated region
    $region14: #{tpu_custom_call.1} parent=1 // pred_check
      _
    $region15: #{tpu_custom_call.1} parent=1 // pred_check_branch
      %23 = sbr.rel (0) target = $region17
    $region16: #{tpu_custom_call.1} parent=1 // pred_region
      _
    $region17: #{tpu_custom_call.1} parent=1 // pred_fallthru
      _
    // Predicated region
    $region18: #{tpu_custom_call.1} parent=1 // pred_check
      _
    $region19: #{tpu_custom_call.1} parent=1 // pred_check_branch
      %25 = sbr.rel (0) target = $region21
    $region20: #{tpu_custom_call.1} parent=1 // pred_region
      _
    $region21: #{tpu_custom_call.1} parent=1 // pred_fallthru
      _
    // Predicated region
    $region22: #{tpu_custom_call.1} parent=1 // pred_check
      _
    $region23: #{tpu_custom_call.1} parent=1 // pred_check_branch
      %27 = sbr.rel (0) target = $region25
    $region24: #{tpu_custom_call.1} parent=1 // pred_region
      _
    $region25: #{tpu_custom_call.1} parent=1 // pred_fallthru
      _
    // Predicated region
    $region26: #{tpu_custom_call.1} parent=1 // pred_check
      _
    $region27: #{tpu_custom_call.1} parent=1 // pred_check_branch
      %29 = sbr.rel (0) target = $region29
    $region28: #{tpu_custom_call.1} parent=1 // pred_region
      _
    $region29: #{tpu_custom_call.1} parent=1 // pred_fallthru
      _
    // Predicated region
    $region30: #{tpu_custom_call.1} parent=1 // pred_check
      _
    $region31: #{tpu_custom_call.1} parent=1 // pred_check_branch
      %31 = sbr.rel (0) target = $region33
    $region32: #{tpu_custom_call.1} parent=1 // pred_region
      _
    $region33: #{tpu_custom_call.1} parent=1 // pred_fallthru
      _
    // Predicated region
    $region34: #{tpu_custom_call.1} parent=1 // pred_check
      _
    $region35: #{tpu_custom_call.1} parent=1 // pred_check_branch
      %33 = sbr.rel (0) target = $region37
    $region36: #{tpu_custom_call.1} parent=1 // pred_region
      _
    $region37: #{tpu_custom_call.1} parent=1 // pred_fallthru
      _
    // Predicated region
    $region38: #{tpu_custom_call.1} parent=1 // pred_check
      _
    $region39: #{tpu_custom_call.1} parent=1 // pred_check_branch
      %35 = sbr.rel (0) target = $region41
    $region40: #{tpu_custom_call.1} parent=1 // pred_region
      _
    $region41: #{tpu_custom_call.1} parent=1 // pred_fallthru
      _
    %v36 = vld [vmem:[%s1] ss:$8 sm:$0x3]
    %s37 = scalar_lea.vmem %s1, 1
    %v38 = vld [vmem:[%s37] ss:$8 sm:$0x3]
    %s39 = scalar_lea.vmem %s1, 2
    %v40 = vld [vmem:[%s39] ss:$8 sm:$0x3]
    %s41 = scalar_lea.vmem %s1, 3
    %v42 = vld [vmem:[%s41] ss:$8 sm:$0x3]
    %s43 = scalar_lea.vmem %s1, 5
    %v44 = vld [vmem:[%s43] ss:$8 sm:$0x3]
    %s45 = scalar_lea.vmem %s1, 6
    %v46 = vld [vmem:[%s45] ss:$8 sm:$0x3]
    %s47 = scalar_lea.vmem %s1, 7
    %v48 = vld [vmem:[%s47] ss:$8 sm:$0x3]
    %s49 = scalar_lea.vmem %s1, 16
    %v50 = vld [vmem:[%s49] ss:$8 sm:$0x3]
    %v51 = vld [vmem:[%s0] sm:$0xff]
    %v52 = vld [vmem:[%s0 + $0x8] sm:$0xff]
    %v53 = vld [vmem:[%s2] sm:$0xff]
    %v54 = vld [vmem:[%s2 + $0x8] sm:$0xff]
    %v55 = vld [vmem:[%s3] sm:$0xff]
    %v56 = vld [vmem:[%s3 + $0x8] sm:$0xff]
    %v57 = vld [vmem:[%s4] sm:$0xff]
    %v58 = vld [vmem:[%s4 + $0x8] sm:$0xff]
    %v59 = vld [vmem:[%s5] sm:$0xff]
    %v60 = vld [vmem:[%s5 + $0x8] sm:$0xff]
    %61 = vrot.lane.b32.xlu0 %v51, 17
    %v62 = vpop.permute.xlu0 %61
    %63 = vrot.lane.b32.xlu0 %v52, 17
    %v64 = vpop.permute.xlu0 %63
    %v65 = vlaneseq
    %v66 = vand.u32 %v65, 127
    %vm67 = vcmp.lt.s32.totalorder %v66, 17
    %v68 = vsel %vm67, %v62, %v64
    %v69 = vsel %vm67, %v64, %v62
    %v71 = vperm.slane %v36, 0
    %v72 = vperm.slane %v36, 1
    %v75 = vmul.f32 %v69, %v71
    %v76 = vmul.f32 %v68, %v72
    %77 = vrot.lane.b32.xlu0 %v51, 16
    %v78 = vpop.permute.xlu0 %77
    %79 = vrot.lane.b32.xlu0 %v52, 16
    %v80 = vpop.permute.xlu0 %79
    %vm81 = vcmp.lt.s32.totalorder %v66, 16
    %v82 = vsel %vm81, %v78, %v80
    %v83 = vsel %vm81, %v80, %v78
    %v85 = vperm.slane %v38, 0
    %v86 = vperm.slane %v38, 1
    %v89 = vmul.f32 %v83, %v85
    %v90 = vmul.f32 %v82, %v86
    %91 = vrot.lane.b32.xlu0 %v51, 15
    %v92 = vpop.permute.xlu0 %91
    %93 = vrot.lane.b32.xlu0 %v52, 15
    %v94 = vpop.permute.xlu0 %93
    %vm95 = vcmp.lt.s32.totalorder %v66, 15
    %v96 = vsel %vm95, %v92, %v94
    %v97 = vsel %vm95, %v94, %v92
    %v99 = vperm.slane %v40, 0
    %v100 = vperm.slane %v40, 1
    %v103 = vmul.f32 %v97, %v99
    %v104 = vmul.f32 %v96, %v100
    %105 = vrot.lane.b32.xlu0 %v51, 1
    %v106 = vpop.permute.xlu0 %105
    %107 = vrot.lane.b32.xlu0 %v52, 1
    %v108 = vpop.permute.xlu0 %107
    %vm109 = vcmp.lt.s32.totalorder %v66, 1
    %v110 = vsel %vm109, %v106, %v108
    %v111 = vsel %vm109, %v108, %v106
    %v113 = vperm.slane %v42, 0
    %v114 = vperm.slane %v42, 1
    %v117 = vmul.f32 %v111, %v113
    %v118 = vmul.f32 %v110, %v114
    %119 = vrot.lane.b32.xlu0 %v51, 127
    %v120 = vpop.permute.xlu0 %119
    %121 = vrot.lane.b32.xlu0 %v52, 127
    %v122 = vpop.permute.xlu0 %121
    %vm123 = vcmp.lt.s32.totalorder %v66, 127
    %v124 = vsel %vm123, %v120, %v122
    %v125 = vsel %vm123, %v122, %v120
    %v127 = vperm.slane %v44, 0
    %v128 = vperm.slane %v44, 1
    %v131 = vmul.f32 %v124, %v127
    %v132 = vmul.f32 %v125, %v128
    %133 = vrot.lane.b32.xlu0 %v51, 113
    %v134 = vpop.permute.xlu0 %133
    %135 = vrot.lane.b32.xlu0 %v52, 113
    %v136 = vpop.permute.xlu0 %135
    %vm137 = vcmp.lt.s32.totalorder %v66, 113
    %v138 = vsel %vm137, %v134, %v136
    %v139 = vsel %vm137, %v136, %v134
    %v141 = vperm.slane %v46, 0
    %v142 = vperm.slane %v46, 1
    %v145 = vmul.f32 %v138, %v141
    %v146 = vmul.f32 %v139, %v142
    %147 = vrot.lane.b32.xlu0 %v51, 112
    %v148 = vpop.permute.xlu0 %147
    %149 = vrot.lane.b32.xlu0 %v52, 112
    %v150 = vpop.permute.xlu0 %149
    %vm151 = vcmp.lt.s32.totalorder %v66, 112
    %v152 = vsel %vm151, %v148, %v150
    %v153 = vsel %vm151, %v150, %v148
    %v155 = vperm.slane %v48, 0
    %v156 = vperm.slane %v48, 1
    %v159 = vmul.f32 %v152, %v155
    %v160 = vmul.f32 %v153, %v156
    %161 = vrot.lane.b32.xlu0 %v51, 111
    %v162 = vpop.permute.xlu0 %161
    %163 = vrot.lane.b32.xlu0 %v52, 111
    %v164 = vpop.permute.xlu0 %163
    %vm165 = vcmp.lt.s32.totalorder %v66, 111
    %v166 = vsel %vm165, %v162, %v164
    %v167 = vsel %vm165, %v164, %v162
    %v169 = vperm.slane %v50, 0
    %v170 = vperm.slane %v50, 1
    %v173 = vmul.f32 %v166, %v169
    %v174 = vmul.f32 %v167, %v170
    %176 = vset.pattern.permute.xlu0 0
    %177 = vperm.xlu0 %176, %v55
    %v178 = vpop.permute.xlu0 %177
    %181 = vset.pattern.permute.xlu0 0
    %182 = vperm.xlu0 %181, %v56
    %v183 = vpop.permute.xlu0 %182
    %vm185 = vcmask 588800
    %v187 = vsel %vm185, %v53, 0
    %v190 = vsel %vm185, %v54, 0
    %192 = vmatpush.msra.mxu0 0.0
    %193 = vmatpush.msra.mxu0 0.0
    %194 = vmatpush.msra.mxu0 0.0
    %195 = vmatpush.msra.mxu0 0.0
    %196 = vmatpush.msra.mxu0 0.0
    %197 = vmatpush.msra.mxu0 0.0
    %198 = vmatpush.msra.mxu0 0.0
    %199 = vmatpush.msra.mxu0 %v173
    %200 = vmatpush.msra.mxu0 %v159
    %201 = vmatpush.msra.mxu0 %v145
    %202 = vmatpush.msra.mxu0 %v131
    %203 = vmatpush.msra.mxu0 %v51
    %204 = vmatpush.msra.mxu0 %v117
    %205 = vmatpush.msra.mxu0 %v103
    %206 = vmatpush.msra.mxu0 %v89
    %207 = vmatpush.msra.mxu0 %v75
    %208 = vmatmul.f32.gmra.mxu0 %v187
    %v209 = vpop.f32.mrf.mxu0
    %v210 = vadd.f32 %v178, %v209
    %211 = vmatmul.f32.gmra.mxu0 %v190
    %v212 = vpop.f32.mrf.mxu0
    %v213 = vadd.f32 %v183, %v212
    %214 = vdwg.mxu0
    %215 = vmatpush.msra.mxu0 0.0
    %216 = vmatpush.msra.mxu0 0.0
    %217 = vmatpush.msra.mxu0 0.0
    %218 = vmatpush.msra.mxu0 0.0
    %219 = vmatpush.msra.mxu0 0.0
    %220 = vmatpush.msra.mxu0 0.0
    %221 = vmatpush.msra.mxu0 0.0
    %222 = vmatpush.msra.mxu0 %v174
    %223 = vmatpush.msra.mxu0 %v160
    %224 = vmatpush.msra.mxu0 %v146
    %225 = vmatpush.msra.mxu0 %v132
    %226 = vmatpush.msra.mxu0 %v52
    %227 = vmatpush.msra.mxu0 %v118
    %228 = vmatpush.msra.mxu0 %v104
    %229 = vmatpush.msra.mxu0 %v90
    %230 = vmatpush.msra.mxu0 %v76
    %231 = vmatmul.f32.gmra.mxu0 %v187
    %v232 = vpop.f32.mrf.mxu0
    %v233 = vadd.f32 %v178, %v232
    %234 = vmatmul.f32.gmra.mxu0 %v190
    %v235 = vpop.f32.mrf.mxu0
    %v236 = vadd.f32 %v183, %v235
    %237 = vdwg.mxu0
    %vm238 = vcmp.gt.f32.partialorder %v210, 0.0
    %vm239 = vcmp.gt.f32.partialorder %v233, 0.0
    %vm240 = vcmp.gt.f32.partialorder %v213, 0.0
    %vm241 = vcmp.gt.f32.partialorder %v236, 0.0
    %v242 = vmul.f32 %v210, 0.01
    %v243 = vmul.f32 %v233, 0.01
    %v244 = vmul.f32 %v213, 0.01
    %v245 = vmul.f32 %v236, 0.01
    %v246 = vsel %vm238, %v210, %v242
    %v247 = vsel %vm239, %v233, %v243
    %v248 = vsel %vm240, %v213, %v244
    %v249 = vsel %vm241, %v236, %v245
    %v250 = vadd.f32 %v246, %v247
    %251 = vadd.xlane.f32.xlu0 %v250
    %v252 = vpop.xlane.xlu0 %251
    %v253 = vadd.f32 %v248, %v249
    %254 = vadd.xlane.f32.xlu0 %v253
    %v255 = vpop.xlane.xlu0 %254
    %v256 = vadd.f32 %v252, %v255
    %v257 = vmul.f32 %v256, 0.001953125
    %259 = vset.pattern.permute.xlu0 0
    %260 = vperm.xlu0 %259, %v257
    %v261 = vpop.permute.xlu0 %260
    %v263 = vsub.f32 %v246, %v261
    %v264 = vsub.f32 %v247, %v261
    %v265 = vsub.f32 %v248, %v261
    %v266 = vsub.f32 %v249, %v261
    %v267 = vmul.f32 %v263, %v263
    %v268 = vmul.f32 %v264, %v264
    %v269 = vmul.f32 %v265, %v265
    %v270 = vmul.f32 %v266, %v266
    %v271 = vadd.f32 %v267, %v268
    %272 = vadd.xlane.f32.xlu0 %v271
    %v273 = vpop.xlane.xlu0 %272
    %v274 = vadd.f32 %v269, %v270
    %275 = vadd.xlane.f32.xlu0 %v274
    %v276 = vpop.xlane.xlu0 %275
    %v277 = vadd.f32 %v273, %v276
    %v278 = vmul.f32 %v277, 0.001953125
    %v279 = vadd.f32 %v278, 1e-05
    %v280 = vrsqrt.pop %v279
    %v281 = vmul.f32 %v280, %v279
    %v282 = vmul.f32 %v281, %v280
    %v283 = vmul.f32 0.5, %v282
    %v284 = vsub.f32 1.5, %v283
    %v285 = vmul.f32 %v280, %v284
    %vm286 = vweird.f32 %v279
    %vm287 = vweird.f32 %v280
    %vm288 = vmor %vm286, %vm287
    %v289 = vsel %vm288, %v280, %v285
    %v290 = vmul.f32 %v57, %v289
    %v291 = vmul.f32 %v58, %v289
    %293 = vset.pattern.permute.xlu0 0
    %294 = vperm.xlu0 %293, %v290
    %v295 = vpop.permute.xlu0 %294
    %298 = vset.pattern.permute.xlu0 0
    %299 = vperm.xlu0 %298, %v291
    %v300 = vpop.permute.xlu0 %299
    %v302 = vmul.f32 %v263, %v295
    %v303 = vmul.f32 %v264, %v295
    %v304 = vmul.f32 %v265, %v300
    %v305 = vmul.f32 %v266, %v300
    %307 = vset.pattern.permute.xlu0 0
    %308 = vperm.xlu0 %307, %v59
    %v309 = vpop.permute.xlu0 %308
    %312 = vset.pattern.permute.xlu0 0
    %313 = vperm.xlu0 %312, %v60
    %v314 = vpop.permute.xlu0 %313
    %v316 = vadd.f32 %v302, %v309
    %v317 = vadd.f32 %v303, %v309
    %v318 = vadd.f32 %v304, %v314
    %v319 = vadd.f32 %v305, %v314
    %v320 = vld [vmem:[%s6] sm:$0xff]
    %v321 = vld [vmem:[%s6 + $0x8] sm:$0xff]
    %v322 = vld [vmem:[%s6 + $0x10] sm:$0xff]
    %v323 = vld [vmem:[%s6 + $0x18] sm:$0xff]
    %v324 = vld [vmem:[%s7] sm:$0xff]
    %v325 = vld [vmem:[%s7 + $0x8] sm:$0xff]
    %v326 = vld [vmem:[%s8] sm:$0xff]
    %v327 = vld [vmem:[%s8 + $0x8] sm:$0xff]
    %v328 = vld [vmem:[%s9] sm:$0xff]
    %v329 = vld [vmem:[%s9 + $0x8] sm:$0xff]
    %330 = vrot.lane.b32.xlu0 %v316, 17
    %v331 = vpop.permute.xlu0 %330
    %332 = vrot.lane.b32.xlu0 %v318, 17
    %v333 = vpop.permute.xlu0 %332
    %334 = vrot.lane.b32.xlu0 %v317, 17
    %v335 = vpop.permute.xlu0 %334
    %336 = vrot.lane.b32.xlu0 %v319, 17
    %v337 = vpop.permute.xlu0 %336
    %v338 = vsel %vm67, %v331, %v335
    %v339 = vsel %vm67, %v333, %v337
    %v340 = vsel %vm67, %v335, %v331
    %v341 = vsel %vm67, %v337, %v333
    %v342 = vmul.f32 %v340, %v71
    %v343 = vmul.f32 %v338, %v72
    %v344 = vmul.f32 %v341, %v71
    %v345 = vmul.f32 %v339, %v72
    %346 = vrot.lane.b32.xlu0 %v316, 16
    %v347 = vpop.permute.xlu0 %346
    %348 = vrot.lane.b32.xlu0 %v318, 16
    %v349 = vpop.permute.xlu0 %348
    %350 = vrot.lane.b32.xlu0 %v317, 16
    %v351 = vpop.permute.xlu0 %350
    %352 = vrot.lane.b32.xlu0 %v319, 16
    %v353 = vpop.permute.xlu0 %352
    %v354 = vsel %vm81, %v347, %v351
    %v355 = vsel %vm81, %v349, %v353
    %v356 = vsel %vm81, %v351, %v347
    %v357 = vsel %vm81, %v353, %v349
    %v358 = vmul.f32 %v356, %v85
    %v359 = vmul.f32 %v354, %v86
    %v360 = vmul.f32 %v357, %v85
    %v361 = vmul.f32 %v355, %v86
    %362 = vrot.lane.b32.xlu0 %v316, 15
    %v363 = vpop.permute.xlu0 %362
    %364 = vrot.lane.b32.xlu0 %v318, 15
    %v365 = vpop.permute.xlu0 %364
    %366 = vrot.lane.b32.xlu0 %v317, 15
    %v367 = vpop.permute.xlu0 %366
    %368 = vrot.lane.b32.xlu0 %v319, 15
    %v369 = vpop.permute.xlu0 %368
    %v370 = vsel %vm95, %v363, %v367
    %v371 = vsel %vm95, %v365, %v369
    %v372 = vsel %vm95, %v367, %v363
    %v373 = vsel %vm95, %v369, %v365
    %v374 = vmul.f32 %v372, %v99
    %v375 = vmul.f32 %v370, %v100
    %v376 = vmul.f32 %v373, %v99
    %v377 = vmul.f32 %v371, %v100
    %378 = vrot.lane.b32.xlu0 %v316, 1
    %v379 = vpop.permute.xlu0 %378
    %380 = vrot.lane.b32.xlu0 %v318, 1
    %v381 = vpop.permute.xlu0 %380
    %382 = vrot.lane.b32.xlu0 %v317, 1
    %v383 = vpop.permute.xlu0 %382
    %384 = vrot.lane.b32.xlu0 %v319, 1
    %v385 = vpop.permute.xlu0 %384
    %v386 = vsel %vm109, %v379, %v383
    %v387 = vsel %vm109, %v381, %v385
    %v388 = vsel %vm109, %v383, %v379
    %v389 = vsel %vm109, %v385, %v381
    %v390 = vmul.f32 %v388, %v113
    %v391 = vmul.f32 %v386, %v114
    %v392 = vmul.f32 %v389, %v113
    %v393 = vmul.f32 %v387, %v114
    %394 = vrot.lane.b32.xlu0 %v316, 127
    %v395 = vpop.permute.xlu0 %394
    %396 = vrot.lane.b32.xlu0 %v318, 127
    %v397 = vpop.permute.xlu0 %396
    %398 = vrot.lane.b32.xlu0 %v317, 127
    %v399 = vpop.permute.xlu0 %398
    %400 = vrot.lane.b32.xlu0 %v319, 127
    %v401 = vpop.permute.xlu0 %400
    %v402 = vsel %vm123, %v395, %v399
    %v403 = vsel %vm123, %v397, %v401
    %v404 = vsel %vm123, %v399, %v395
    %v405 = vsel %vm123, %v401, %v397
    %v406 = vmul.f32 %v402, %v127
    %v407 = vmul.f32 %v404, %v128
    %v408 = vmul.f32 %v403, %v127
    %v409 = vmul.f32 %v405, %v128
    %410 = vrot.lane.b32.xlu0 %v316, 113
    %v411 = vpop.permute.xlu0 %410
    %412 = vrot.lane.b32.xlu0 %v318, 113
    %v413 = vpop.permute.xlu0 %412
    %414 = vrot.lane.b32.xlu0 %v317, 113
    %v415 = vpop.permute.xlu0 %414
    %416 = vrot.lane.b32.xlu0 %v319, 113
    %v417 = vpop.permute.xlu0 %416
    %v418 = vsel %vm137, %v411, %v415
    %v419 = vsel %vm137, %v413, %v417
    %v420 = vsel %vm137, %v415, %v411
    %v421 = vsel %vm137, %v417, %v413
    %v422 = vmul.f32 %v418, %v141
    %v423 = vmul.f32 %v420, %v142
    %v424 = vmul.f32 %v419, %v141
    %v425 = vmul.f32 %v421, %v142
    %426 = vrot.lane.b32.xlu0 %v316, 112
    %v427 = vpop.permute.xlu0 %426
    %428 = vrot.lane.b32.xlu0 %v318, 112
    %v429 = vpop.permute.xlu0 %428
    %430 = vrot.lane.b32.xlu0 %v317, 112
    %v431 = vpop.permute.xlu0 %430
    %432 = vrot.lane.b32.xlu0 %v319, 112
    %v433 = vpop.permute.xlu0 %432
    %v434 = vsel %vm151, %v427, %v431
    %v435 = vsel %vm151, %v429, %v433
    %v436 = vsel %vm151, %v431, %v427
    %v437 = vsel %vm151, %v433, %v429
    %v438 = vmul.f32 %v434, %v155
    %v439 = vmul.f32 %v436, %v156
    %v440 = vmul.f32 %v435, %v155
    %v441 = vmul.f32 %v437, %v156
    %442 = vrot.lane.b32.xlu0 %v316, 111
    %v443 = vpop.permute.xlu0 %442
    %444 = vrot.lane.b32.xlu0 %v318, 111
    %v445 = vpop.permute.xlu0 %444
    %446 = vrot.lane.b32.xlu0 %v317, 111
    %v447 = vpop.permute.xlu0 %446
    %448 = vrot.lane.b32.xlu0 %v319, 111
    %v449 = vpop.permute.xlu0 %448
    %v450 = vsel %vm165, %v443, %v447
    %v451 = vsel %vm165, %v445, %v449
    %v452 = vsel %vm165, %v447, %v443
    %v453 = vsel %vm165, %v449, %v445
    %v454 = vmul.f32 %v450, %v169
    %v455 = vmul.f32 %v452, %v170
    %v456 = vmul.f32 %v451, %v169
    %v457 = vmul.f32 %v453, %v170
    %459 = vset.pattern.permute.xlu0 0
    %460 = vperm.xlu0 %459, %v324
    %v461 = vpop.permute.xlu0 %460
    %464 = vset.pattern.permute.xlu0 0
    %465 = vperm.xlu0 %464, %v325
    %v466 = vpop.permute.xlu0 %465
    %vm468 = vcmask 130048
    %v470 = vsel %vm468, %v321, 0
    %v473 = vsel %vm468, %v323, 0
    %475 = vmatpush.msra.mxu0 %v440
    %476 = vmatpush.msra.mxu0 %v438
    %477 = vmatpush.msra.mxu0 %v424
    %478 = vmatpush.msra.mxu0 %v422
    %479 = vmatpush.msra.mxu0 %v408
    %480 = vmatpush.msra.mxu0 %v406
    %481 = vmatpush.msra.mxu0 %v318
    %482 = vmatpush.msra.mxu0 %v316
    %483 = vmatpush.msra.mxu0 %v392
    %484 = vmatpush.msra.mxu0 %v390
    %485 = vmatpush.msra.mxu0 %v376
    %486 = vmatpush.msra.mxu0 %v374
    %487 = vmatpush.msra.mxu0 %v360
    %488 = vmatpush.msra.mxu0 %v358
    %489 = vmatpush.msra.mxu0 %v344
    %490 = vmatpush.msra.mxu0 %v342
    %491 = vmatmul.f32.gmra.mxu0 %v320
    %v492 = vpop.f32.mrf.mxu0
    %v493 = vadd.f32 %v461, %v492
    %494 = vmatmul.f32.gmra.mxu0 %v322
    %v495 = vpop.f32.mrf.mxu0
    %v496 = vadd.f32 %v466, %v495
    %497 = vdwg.mxu0
    %498 = vmatpush.msra.mxu0 0.0
    %499 = vmatpush.msra.mxu0 0.0
    %500 = vmatpush.msra.mxu0 0.0
    %501 = vmatpush.msra.mxu0 0.0
    %502 = vmatpush.msra.mxu0 0.0
    %503 = vmatpush.msra.mxu0 0.0
    %504 = vmatpush.msra.mxu0 0.0
    %505 = vmatpush.msra.mxu0 0.0
    %506 = vmatpush.msra.mxu0 0.0
    %507 = vmatpush.msra.mxu0 0.0
    %508 = vmatpush.msra.mxu0 0.0
    %509 = vmatpush.msra.mxu0 0.0
    %510 = vmatpush.msra.mxu0 0.0
    %511 = vmatpush.msra.mxu0 0.0
    %512 = vmatpush.msra.mxu0 %v456
    %513 = vmatpush.msra.mxu0 %v454
    %514 = vmatmul.f32.gmra.mxu0 %v470
    %v515 = vpop.f32.mrf.mxu0
    %v516 = vadd.f32 %v493, %v515
    %517 = vmatmul.f32.gmra.mxu0 %v473
    %v518 = vpop.f32.mrf.mxu0
    %v519 = vadd.f32 %v496, %v518
    %520 = vdwg.mxu0
    %521 = vmatpush.msra.mxu0 %v441
    %522 = vmatpush.msra.mxu0 %v439
    %523 = vmatpush.msra.mxu0 %v425
    %524 = vmatpush.msra.mxu0 %v423
    %525 = vmatpush.msra.mxu0 %v409
    %526 = vmatpush.msra.mxu0 %v407
    %527 = vmatpush.msra.mxu0 %v319
    %528 = vmatpush.msra.mxu0 %v317
    %529 = vmatpush.msra.mxu0 %v393
    %530 = vmatpush.msra.mxu0 %v391
    %531 = vmatpush.msra.mxu0 %v377
    %532 = vmatpush.msra.mxu0 %v375
    %533 = vmatpush.msra.mxu0 %v361
    %534 = vmatpush.msra.mxu0 %v359
    %535 = vmatpush.msra.mxu0 %v345
    %536 = vmatpush.msra.mxu0 %v343
    %537 = vmatmul.f32.gmra.mxu0 %v320
    %v538 = vpop.f32.mrf.mxu0
    %v539 = vadd.f32 %v461, %v538
    %540 = vmatmul.f32.gmra.mxu0 %v322
    %v541 = vpop.f32.mrf.mxu0
    %v542 = vadd.f32 %v466, %v541
    %543 = vdwg.mxu0
    %544 = vmatpush.msra.mxu0 0.0
    %545 = vmatpush.msra.mxu0 0.0
    %546 = vmatpush.msra.mxu0 0.0
    %547 = vmatpush.msra.mxu0 0.0
    %548 = vmatpush.msra.mxu0 0.0
    %549 = vmatpush.msra.mxu0 0.0
    %550 = vmatpush.msra.mxu0 0.0
    %551 = vmatpush.msra.mxu0 0.0
    %552 = vmatpush.msra.mxu0 0.0
    %553 = vmatpush.msra.mxu0 0.0
    %554 = vmatpush.msra.mxu0 0.0
    %555 = vmatpush.msra.mxu0 0.0
    %556 = vmatpush.msra.mxu0 0.0
    %557 = vmatpush.msra.mxu0 0.0
    %558 = vmatpush.msra.mxu0 %v457
    %559 = vmatpush.msra.mxu0 %v455
    %560 = vmatmul.f32.gmra.mxu0 %v470
    %v561 = vpop.f32.mrf.mxu0
    %v562 = vadd.f32 %v539, %v561
    %563 = vmatmul.f32.gmra.mxu0 %v473
    %v564 = vpop.f32.mrf.mxu0
    %v565 = vadd.f32 %v542, %v564
    %566 = vdwg.mxu0
    %vm567 = vcmp.gt.f32.partialorder %v516, 0.0
    %vm568 = vcmp.gt.f32.partialorder %v562, 0.0
    %vm569 = vcmp.gt.f32.partialorder %v519, 0.0
    %vm570 = vcmp.gt.f32.partialorder %v565, 0.0
    %v571 = vmul.f32 %v516, 0.01
    %v572 = vmul.f32 %v562, 0.01
    %v573 = vmul.f32 %v519, 0.01
    %v574 = vmul.f32 %v565, 0.01
    %v575 = vsel %vm567, %v516, %v571
    %v576 = vsel %vm568, %v562, %v572
    %v577 = vsel %vm569, %v519, %v573
    %v578 = vsel %vm570, %v565, %v574
    %v579 = vadd.f32 %v575, %v576
    %580 = vadd.xlane.f32.xlu0 %v579
    %v581 = vpop.xlane.xlu0 %580
    %v582 = vadd.f32 %v577, %v578
    %583 = vadd.xlane.f32.xlu0 %v582
    %v584 = vpop.xlane.xlu0 %583
    %v585 = vadd.f32 %v581, %v584
    %v586 = vmul.f32 %v585, 0.001953125
    %588 = vset.pattern.permute.xlu0 0
    %589 = vperm.xlu0 %588, %v586
    %v590 = vpop.permute.xlu0 %589
    %v592 = vsub.f32 %v575, %v590
    %v593 = vsub.f32 %v576, %v590
    %v594 = vsub.f32 %v577, %v590
    %v595 = vsub.f32 %v578, %v590
    %v596 = vmul.f32 %v592, %v592
    %v597 = vmul.f32 %v593, %v593
    %v598 = vmul.f32 %v594, %v594
    %v599 = vmul.f32 %v595, %v595
    %v600 = vadd.f32 %v596, %v597
    %601 = vadd.xlane.f32.xlu0 %v600
    %v602 = vpop.xlane.xlu0 %601
    %v603 = vadd.f32 %v598, %v599
    %604 = vadd.xlane.f32.xlu0 %v603
    %v605 = vpop.xlane.xlu0 %604
    %v606 = vadd.f32 %v602, %v605
    %v607 = vmul.f32 %v606, 0.001953125
    %v608 = vadd.f32 %v607, 1e-05
    %v609 = vrsqrt.pop %v608
    %v610 = vmul.f32 %v609, %v608
    %v611 = vmul.f32 %v610, %v609
    %v612 = vmul.f32 0.5, %v611
    %v613 = vsub.f32 1.5, %v612
    %v614 = vmul.f32 %v609, %v613
    %vm615 = vweird.f32 %v608
    %vm616 = vweird.f32 %v609
    %vm617 = vmor %vm615, %vm616
    %v618 = vsel %vm617, %v609, %v614
    %v619 = vmul.f32 %v326, %v618
    %v620 = vmul.f32 %v327, %v618
    %622 = vset.pattern.permute.xlu0 0
    %623 = vperm.xlu0 %622, %v619
    %v624 = vpop.permute.xlu0 %623
    %627 = vset.pattern.permute.xlu0 0
    %628 = vperm.xlu0 %627, %v620
    %v629 = vpop.permute.xlu0 %628
    %v631 = vmul.f32 %v592, %v624
    %v632 = vmul.f32 %v593, %v624
    %v633 = vmul.f32 %v594, %v629
    %v634 = vmul.f32 %v595, %v629
    %636 = vset.pattern.permute.xlu0 0
    %637 = vperm.xlu0 %636, %v328
    %v638 = vpop.permute.xlu0 %637
    %641 = vset.pattern.permute.xlu0 0
    %642 = vperm.xlu0 %641, %v329
    %v643 = vpop.permute.xlu0 %642
    %v645 = vadd.f32 %v631, %v638
    %v646 = vadd.f32 %v632, %v638
    %v647 = vadd.f32 %v633, %v643
    %v648 = vadd.f32 %v634, %v643
    %649 = vst [vmem:[#allocation2] sm:$0xff] %v316
    %650 = vst [vmem:[#allocation2 + $0x8] sm:$0xff] %v317
    %651 = vst [vmem:[#allocation2 + $0x10] sm:$0xff] %v645
    %652 = vst [vmem:[#allocation2 + $0x18] sm:$0xff] %v646
    %653 = vst [vmem:[#allocation2 + $0x20] sm:$0xff] %v318
    %654 = vst [vmem:[#allocation2 + $0x28] sm:$0xff] %v319
    %655 = vst [vmem:[#allocation2 + $0x30] sm:$0xff] %v647
    %656 = vst [vmem:[#allocation2 + $0x38] sm:$0xff] %v648
    // Predicated region
    $region42: #{tpu_custom_call.1} parent=1 // pred_check
      _
    $region43: #{tpu_custom_call.1} parent=1 // pred_check_branch
      %658 = sbr.rel (0) target = $region45
    $region44: #{tpu_custom_call.1} parent=1 // pred_region
      %660 = vsyncadd [#allocation3], 0
      %s661 = sshll.u32 [#allocation2], 4
      %s662 = int_to_ptr.vmem [resolvable:$true] %s661
      %s663 = sshll.u32 %s10, 4
      %s664 = int_to_ptr.hbm [resolvable:$true] %s663
      %669 = dma.vmem_to_hbm [thread:$0]  %s662, 1024, %s664, [#allocation3], 256, 256, 16
    $region45: #{tpu_custom_call.1} parent=1 // pred_fallthru
      _
    // Predicated region
    $region46: #{tpu_custom_call.1} parent=1 // pred_check
      _
    $region47: #{tpu_custom_call.1} parent=1 // pred_check_branch
      %671 = sbr.rel (0) target = $region49
    $region48: #{tpu_custom_call.1} parent=1 // pred_region
      %673 = dma.done [#allocation3], 1024
    $region49: #{tpu_custom_call.1} parent=1 // pred_fallthru
      _
    %674 = vsyncpa [#allocation3], 1

</llo_original>
